<compile_context>
chip_gen: v7x
topology: tpu7x:2x2x1
jax: 0.10.0
libtpu: 0.0.40
codegen_flags: <defaults>
</compile_context>

<pallas_src>
import functools
import math

import jax
import jax.numpy as jnp
from jax.experimental import pallas as pl
from jax.experimental.pallas import tpu as pltpu


# --------------------------------------------------------------------------------------
# Helpers
# --------------------------------------------------------------------------------------
def _vmem_capacity_bytes():
    """Physical VMEM per TensorCore; conservative 64 MiB (v7x) fallback if the query fails."""
    try:
        cap = int(getattr(pltpu.get_tpu_info(), "vmem_capacity_bytes", 0))
        if cap > 0:
            return cap
    except Exception:
        pass
    return 64 * 1024 * 1024


def _sublanes(dtype):
    """Rows per packed sublane tile: 8 for 4-byte, 16 for 2-byte, 32 for 1-byte dtypes."""
    return 8 * max(1, 4 // jnp.dtype(dtype).itemsize)


def _row_inv_std(s1, s2, reduce_size, eps):
    """Per-row (mean, 1/(std+eps)) from sum / sum-of-squares; ddof=1 to match torch .std()."""
    mean = s1 * (1.0 / reduce_size)
    var = (s2 - s1 * mean) * (1.0 / (reduce_size - 1))
    var = jnp.maximum(var, 0.0)              # guard f32 cancellation of the single-pass form
    d = jnp.sqrt(var) + eps                  # module adds eps to std (not var)
    r = pl.reciprocal(d, approx=True)        # EUP slot (free); operates on a (BR, 1) vector
    r = r * (2.0 - d * r)                    # one Newton step -> ~exact f32, negligible cost
    return mean, r


# --------------------------------------------------------------------------------------
# Kernels
# --------------------------------------------------------------------------------------
def _fused_kernel(x_ref, w_ref, b_ref, o_ref, *, eps, reduce_size, reps):
    # x_ref: (BR, M) rows = (sample, group); w_ref/b_ref: (PR, M) affine pattern, BR = reps*PR.
    x = x_ref[...].astype(jnp.float32)
    s1 = jnp.sum(x, axis=-1, keepdims=True)              # (BR, 1)
    s2 = jnp.sum(x * x, axis=-1, keepdims=True)          # (BR, 1)
    mean, inv = _row_inv_std(s1, s2, reduce_size, eps)
    a = inv                                              # (BR, 1)
    c = -mean * inv                                      # (BR, 1)
    w = w_ref[...].astype(jnp.float32)
    b = b_ref[...].astype(jnp.float32)
    if reps > 1:
        w = jnp.tile(w, (reps, 1))                       # expand tiny pattern in-kernel
        b = jnp.tile(b, (reps, 1))
    # Two FMAs per element: y = (x*a + c) * w + b.
    o_ref[...] = ((x * a + c) * w + b).astype(o_ref.dtype)


def _stats_kernel(x_ref, mean_ref, inv_ref, s1_ref, s2_ref, *,
                  eps, reduce_size, m_block, m_total, mask_cols):
    # Split-M pass 1: accumulate per-row sum / sum-of-squares over M tiles.
    j = pl.program_id(1)

    @pl.when(j == 0)
    def _():
        s1_ref[...] = jnp.zeros_like(s1_ref)
        s2_ref[...] = jnp.zeros_like(s2_ref)

    x = x_ref[...].astype(jnp.float32)
    if mask_cols:  # last M tile may be partial: zero out-of-range columns before reducing
        col = jax.lax.broadcasted_iota(jnp.int32, x.shape, 1) + j * m_block
        x = jnp.where(col < m_total, x, 0.0)
    s1_ref[...] += jnp.sum(x, axis=-1, keepdims=True)
    s2_ref[...] += jnp.sum(x * x, axis=-1, keepdims=True)

    @pl.when(j == pl.num_programs(1) - 1)
    def _():
        mean, inv = _row_inv_std(s1_ref[...], s2_ref[...], reduce_size, eps)
        mean_ref[...] = mean
        inv_ref[...] = inv


def _normalize_kernel(x_ref, mean_ref, inv_ref, w_ref, b_ref, o_ref, *, reps):
    # Split-M pass 2: re-read x and apply the per-row stats + per-channel affine.
    x = x_ref[...].astype(jnp.float32)
    a = inv_ref[...]
    c = -mean_ref[...] * a
    w = w_ref[...].astype(jnp.float32)
    b = b_ref[...].astype(jnp.float32)
    if reps > 1:
        w = jnp.tile(w, (reps, 1))
        b = jnp.tile(b, (reps, 1))
    o_ref[...] = ((x * a + c) * w + b).astype(o_ref.dtype)


# --------------------------------------------------------------------------------------
# Wrapper
# --------------------------------------------------------------------------------------
def group_norm_pallas(x, weight, bias, *, num_groups=4, eps=1e-5, m_block=None):
    """x: (N, C, H, W) NCHW.  weight/bias: per-channel affine params ((C,) or (C,1,1)).

    m_block: optional override forcing the split-M two-pass path with the given M tile
             (used for testing the large-Cg*H*W fallback on small inputs).
    """
    N, C, H, W = x.shape
    G = num_groups
    assert C % G == 0, "num_channels must be divisible by num_groups"
    Cg = C // G
    HW = H * W
    M = Cg * HW
    ROWS = N * G
    assert M > 1, "group size must be > 1 for unbiased std (ddof=1)"

    weight = jnp.asarray(weight).reshape(-1)
    bias = jnp.asarray(bias).reshape(-1)
    assert weight.shape[0] == C and bias.shape[0] == C

    # (N, C, H, W) -> (N*G, M): contiguous view, no data movement.
    # NOTE: stores are lane-dense (unmasked) when M is a multiple of 128; odd H*W still
    # works but uses masked stores.
    # TODO(synk): pad M up to a multiple of 128 (with a masked element count) for odd H*W.
    x_rows = x.reshape(ROWS, M)
    itemsize = jnp.dtype(x.dtype).itemsize

    # ---- Hardware-aware sizing -------------------------------------------------------
    vmem_cap = _vmem_capacity_bytes()                    # 128 MiB v5e/v6e, 64 MiB v7x
    budget = (vmem_cap * 5) // 8                         # pipeline buffers + in-kernel temps
    vmem_limit = (vmem_cap * 7) // 8

    # Rows per block must be a multiple of lcm(packed sublanes, G): sublane-aligned and
    # every block starts on a group boundary (so the affine pattern lines up).
    ROW_ALIGN = math.lcm(_sublanes(x.dtype), G)

    # ---- Affine pattern: tiny (pattern_rows, M) tile, constant index_map -------------
    pattern_rows = ROW_ALIGN if ROWS > ROW_ALIGN else ROWS   # always a multiple of G
    w_pat = jnp.broadcast_to(weight.reshape(G, Cg, 1), (G, Cg, HW)).reshape(G, M)
    b_pat = jnp.broadcast_to(bias.reshape(G, Cg, 1), (G, Cg, HW)).reshape(G, M)
    w_pat = jnp.tile(w_pat, (pattern_rows // G, 1))
    b_pat = jnp.tile(b_pat, (pattern_rows // G, 1))
    param_itemsize = jnp.dtype(w_pat.dtype).itemsize
    param_bytes = 2 * 2 * pattern_rows * M * param_itemsize  # w,b, double-buffered (tiny)

    # Cost of one ROW_ALIGN-row unit: x/out double-buffered (4 copies) plus a conservative
    # allowance (16 B/elem) for the in-kernel f32 cast / pattern-expansion temporaries.
    unit_bytes = ROW_ALIGN * M * (4 * itemsize + 16)
    fused_fits = (unit_bytes + param_bytes) <= budget

    if m_block is None and fused_fits:
        # ------------------------- fused single-pass path -----------------------------
        if ROWS <= ROW_ALIGN:
            block_rows = ROWS                            # full-extent block: always legal
        else:
            units_cap = max(1, (budget - param_bytes) // unit_bytes)
            units_total = ROWS // ROW_ALIGN
            # Target >= 4 grid steps when the data allows it (>= 2 per TensorCore on v7x);
            # never force a split of a problem that only has a couple of row blocks.
            # TODO(synk): query the TensorCore count to skip the split on single-TC chips.
            units_target = max(1, units_total // 4) if units_total >= 4 else units_total
            block_rows = max(1, min(units_cap, units_target)) * ROW_ALIGN
        reps = block_rows // pattern_rows
        grid = (pl.cdiv(ROWS, block_rows),)

        kernel = functools.partial(_fused_kernel, eps=eps, reduce_size=M, reps=reps)
        out_rows = pl.pallas_call(
            kernel,
            out_shape=jax.ShapeDtypeStruct((ROWS, M), x.dtype),
            grid_spec=pltpu.PrefetchScalarGridSpec(
                num_scalar_prefetch=0,
                grid=grid,
                in_specs=[
                    pl.BlockSpec((block_rows, M), lambda i: (i, 0)),
                    pl.BlockSpec((pattern_rows, M), lambda i: (0, 0)),   # loaded once
                    pl.BlockSpec((pattern_rows, M), lambda i: (0, 0)),   # loaded once
                ],
                out_specs=pl.BlockSpec((block_rows, M), lambda i: (i, 0)),
            ),
            compiler_params=pltpu.CompilerParams(
                dimension_semantics=("parallel",),
                vmem_limit_bytes=vmem_limit,
            ),
        )(x_rows, w_pat, b_pat)
        return out_rows.reshape(N, C, H, W)

    # --------------------- split-M two-pass path (large Cg*H*W) -----------------------
    block_rows = min(ROWS, ROW_ALIGN)
    reps = block_rows // pattern_rows                    # == 1 by construction
    if m_block is None:
        per_col = 4 * block_rows * itemsize + 4 * pattern_rows * param_itemsize + 16 * block_rows
        m_block = max(128, ((budget // per_col) // 128) * 128)
    m_block = min(m_block, M)
    assert m_block % 128 == 0 or m_block == M
    m_grid = pl.cdiv(M, m_block)
    mask_cols = (M % m_block) != 0
    row_grid = pl.cdiv(ROWS, block_rows)

    stats = functools.partial(_stats_kernel, eps=eps, reduce_size=M,
                              m_block=m_block, m_total=M, mask_cols=mask_cols)
    mean, inv = pl.pallas_call(
        stats,
        out_shape=(jax.ShapeDtypeStruct((ROWS, 1), jnp.float32),
                   jax.ShapeDtypeStruct((ROWS, 1), jnp.float32)),
        grid_spec=pltpu.PrefetchScalarGridSpec(
            num_scalar_prefetch=0,
            grid=(row_grid, m_grid),
            in_specs=[pl.BlockSpec((block_rows, m_block), lambda i, j: (i, j))],
            out_specs=[pl.BlockSpec((block_rows, 1), lambda i, j: (i, 0)),
                       pl.BlockSpec((block_rows, 1), lambda i, j: (i, 0))],
            scratch_shapes=[pltpu.VMEM((block_rows, 1), jnp.float32),
                            pltpu.VMEM((block_rows, 1), jnp.float32)],
        ),
        compiler_params=pltpu.CompilerParams(
            dimension_semantics=("parallel", "arbitrary"),
            vmem_limit_bytes=vmem_limit,
        ),
    )(x_rows)

    norm = functools.partial(_normalize_kernel, reps=reps)
    out_rows = pl.pallas_call(
        norm,
        out_shape=jax.ShapeDtypeStruct((ROWS, M), x.dtype),
        grid_spec=pltpu.PrefetchScalarGridSpec(
            num_scalar_prefetch=0,
            grid=(row_grid, m_grid),
            in_specs=[
                pl.BlockSpec((block_rows, m_block), lambda i, j: (i, j)),
                pl.BlockSpec((block_rows, 1), lambda i, j: (i, 0)),
                pl.BlockSpec((block_rows, 1), lambda i, j: (i, 0)),
                pl.BlockSpec((pattern_rows, m_block), lambda i, j: (0, j)),
                pl.BlockSpec((pattern_rows, m_block), lambda i, j: (0, j)),
            ],
            out_specs=pl.BlockSpec((block_rows, m_block), lambda i, j: (i, j)),
        ),
        compiler_params=pltpu.CompilerParams(
            dimension_semantics=("parallel", "parallel"),
            vmem_limit_bytes=vmem_limit,
        ),
    )(x_rows, mean, inv, w_pat, b_pat)
    return out_rows.reshape(N, C, H, W)


# --------------------------------------------------------------------------------------
# Pure-JAX reference mirroring the PyTorch module exactly
# --------------------------------------------------------------------------------------
def group_norm_ref(x, weight, bias, *, num_groups=4, eps=1e-5):
    N, C, H, W = x.shape
    G = num_groups
    xr = x.reshape(N, G, -1).astype(jnp.float32)
    mean = jnp.mean(xr, axis=2, keepdims=True)
    n = xr.shape[2]
    std = jnp.sqrt(jnp.sum((xr - mean) ** 2, axis=2, keepdims=True) / (n - 1))
    y = ((xr - mean) / (std + eps)).reshape(N, C, H, W)
    w = jnp.asarray(weight).reshape(1, C, 1, 1)
    b = jnp.asarray(bias).reshape(1, C, 1, 1)
    return (y * w + b).astype(x.dtype)


if __name__ == "__main__":
    num_groups = 4
    num_channels = 32
    eps = 1e-5

    key = jax.random.PRNGKey(0)
    k1, k2, k3, k4 = jax.random.split(key, 4)

    def check(x, w, b, name, tol=1e-4, **kw):
        out = jax.block_until_ready(
            group_norm_pallas(x, w, b, num_groups=num_groups, eps=eps, **kw))
        ref = group_norm_ref(x, w, b, num_groups=num_groups, eps=eps)
        assert out.shape == x.shape and out.dtype == x.dtype
        err = jnp.max(jnp.abs(out.astype(jnp.float32) - ref.astype(jnp.float32)))
        assert jnp.allclose(out, ref, atol=tol, rtol=tol), f"{name}: max abs err {err}"

    # Module defaults: weight = ones(C,1,1), bias = zeros(C,1,1) (stored flat here).
    weight = jnp.ones((num_channels,), dtype=jnp.float32)
    bias = jnp.zeros((num_channels,), dtype=jnp.float32)

    x1 = jax.random.normal(k1, (2, num_channels, 8, 8), dtype=jnp.float32)
    check(x1, weight, bias, "fused/default-affine")

    # Non-trivial affine params exercise the per-channel pattern machinery.
    wr = jax.random.normal(k2, (num_channels,), dtype=jnp.float32)
    br = jax.random.normal(k3, (num_channels,), dtype=jnp.float32)
    check(x1, wr, br, "fused/random-affine")

    # Force the split-M two-pass fallback (large-Cg*H*W path) on the small input.
    check(x1, wr, br, "split-M", m_block=128)

    # Ragged row count (partial last block), reps>1 in-kernel pattern expansion, odd M.
    x2 = jax.random.normal(k4, (5, num_channels, 6, 7), dtype=jnp.float32)
    check(x2, wr, br, "ragged/reps>1")

    print("KERNEL_OK")
</pallas_src>

<mosaic_0001>
module attributes {stable_mosaic.version = 11 : i64} {
  func.func @_fused_kernel(%arg0: i32, %arg1: memref<8x512xf32, #tpu.memory_space<vmem>>, %arg2: memref<8x512xf32, #tpu.memory_space<vmem>>, %arg3: memref<8x512xf32, #tpu.memory_space<vmem>>, %arg4: memref<8x512xf32, #tpu.memory_space<vmem>>) attributes {dimension_semantics = [#tpu.dimension_semantics<parallel>], iteration_bounds = array<i64: 1>, scalar_prefetch = 0 : i64, scratch_operands = 0 : i64, tpu.core_type = #tpu.core_type<tc>, window_params = [{transform_indices = @transform_0, window_bounds = array<i64: 8, 512>}, {pipeline_mode = #tpu.pipeline_mode<synchronous>, transform_indices = @transform_1, window_bounds = array<i64: 8, 512>}, {pipeline_mode = #tpu.pipeline_mode<synchronous>, transform_indices = @transform_2, window_bounds = array<i64: 8, 512>}, {transform_indices = @transform_3, window_bounds = array<i64: 8, 512>}]} {
    %c0 = arith.constant 0 : index
    %c0_0 = arith.constant 0 : index
    %0 = vector.load %arg1[%c0, %c0_0] : memref<8x512xf32, #tpu.memory_space<vmem>>, vector<8x512xf32>
    %cst = arith.constant dense<0.000000e+00> : vector<8xf32>
    %1 = vector.multi_reduction <add>, %0, %cst [1] : vector<8x512xf32> to vector<8xf32>
    %2 = vector.shape_cast %1 : vector<8xf32> to vector<8x1xf32>
    %3 = arith.mulf %0, %0 : vector<8x512xf32>
    %cst_1 = arith.constant dense<0.000000e+00> : vector<8xf32>
    %4 = vector.multi_reduction <add>, %3, %cst_1 [1] : vector<8x512xf32> to vector<8xf32>
    %5 = vector.shape_cast %4 : vector<8xf32> to vector<8x1xf32>
    %cst_2 = arith.constant 0.001953125 : f32
    %6 = vector.broadcast %cst_2 : f32 to vector<8x1xf32>
    %7 = arith.mulf %2, %6 : vector<8x1xf32>
    %8 = arith.mulf %2, %7 : vector<8x1xf32>
    %9 = arith.subf %5, %8 : vector<8x1xf32>
    %cst_3 = arith.constant 0.00195694715 : f32
    %10 = vector.broadcast %cst_3 : f32 to vector<8x1xf32>
    %11 = arith.mulf %9, %10 : vector<8x1xf32>
    %cst_4 = arith.constant 0.000000e+00 : f32
    %12 = vector.broadcast %cst_4 : f32 to vector<8x1xf32>
    %13 = arith.maximumf %11, %12 : vector<8x1xf32>
    %14 = math.sqrt %13 : vector<8x1xf32>
    %cst_5 = arith.constant 9.99999974E-6 : f32
    %15 = vector.broadcast %cst_5 : f32 to vector<8x1xf32>
    %16 = arith.addf %14, %15 : vector<8x1xf32>
    %17 = tpu.reciprocal %16 {approx = true} : vector<8x1xf32> -> vector<8x1xf32>
    %18 = arith.mulf %16, %17 : vector<8x1xf32>
    %cst_6 = arith.constant 2.000000e+00 : f32
    %19 = vector.broadcast %cst_6 : f32 to vector<8x1xf32>
    %20 = arith.subf %19, %18 : vector<8x1xf32>
    %21 = arith.mulf %17, %20 : vector<8x1xf32>
    %cst_7 = arith.constant 0.000000e+00 : f32
    %22 = vector.broadcast %cst_7 : f32 to vector<8x1xf32>
    %23 = arith.subf %22, %7 : vector<8x1xf32>
    %24 = arith.mulf %23, %21 : vector<8x1xf32>
    %c0_8 = arith.constant 0 : index
    %c0_9 = arith.constant 0 : index
    %25 = vector.load %arg2[%c0_8, %c0_9] : memref<8x512xf32, #tpu.memory_space<vmem>>, vector<8x512xf32>
    %c0_10 = arith.constant 0 : index
    %c0_11 = arith.constant 0 : index
    %26 = vector.load %arg3[%c0_10, %c0_11] : memref<8x512xf32, #tpu.memory_space<vmem>>, vector<8x512xf32>
    %27 = vector.broadcast %21 : vector<8x1xf32> to vector<8x512xf32>
    %28 = arith.mulf %0, %27 : vector<8x512xf32>
    %29 = vector.broadcast %24 : vector<8x1xf32> to vector<8x512xf32>
    %30 = arith.addf %28, %29 : vector<8x512xf32>
    %31 = arith.mulf %30, %25 : vector<8x512xf32>
    %32 = arith.addf %31, %26 : vector<8x512xf32>
    %c0_12 = arith.constant 0 : index
    %c0_13 = arith.constant 0 : index
    %33 = vector.load %arg4[%c0_12, %c0_13] : memref<8x512xf32, #tpu.memory_space<vmem>>, vector<8x512xf32>
    tpu.vector_store %arg4[%c0_12, %c0_13], %32 {strides = array<i32>} : memref<8x512xf32, #tpu.memory_space<vmem>>, vector<8x512xf32>,
    return
  }
  func.func @transform_0(%arg0: i32) -> (i32, i32) {
    %c0_i32 = arith.constant 0 : i32
    %c0_i32_0 = arith.constant 0 : i32
    return %arg0, %c0_i32 : i32, i32
  }
  func.func @transform_1(%arg0: i32) -> (i32, i32) {
    %c0_i32 = arith.constant 0 : i32
    %c0_i32_0 = arith.constant 0 : i32
    %c0_i32_1 = arith.constant 0 : i32
    return %c0_i32, %c0_i32_0 : i32, i32
  }
  func.func @transform_2(%arg0: i32) -> (i32, i32) {
    %c0_i32 = arith.constant 0 : i32
    %c0_i32_0 = arith.constant 0 : i32
    %c0_i32_1 = arith.constant 0 : i32
    return %c0_i32, %c0_i32_0 : i32, i32
  }
  func.func @transform_3(%arg0: i32) -> (i32, i32) {
    %c0_i32 = arith.constant 0 : i32
    %c0_i32_0 = arith.constant 0 : i32
    return %arg0, %c0_i32 : i32, i32
  }
}

</mosaic_0001>

<llo_original>
// kernel: tpu_custom_call.1
$region0: #{tpu_custom_call.1}
  #allocation0 [shape = 'u32[]', space=smem, size = 0x4, offset = 0x4, fixed_abs, tag = 'smem constant byte address 0x4 - core index']
  #allocation1 [shape = 'u32[144,128]{1,0:T(1,128)}', space=vmem, size = 0x12000, scoped, tag = 'internal scratch']
  %s0 = inlined_call_operand.hbm [shape: f32[8,512], index: 0, kind: input, shape index: {}]
  %s1 = inlined_call_operand.hbm [shape: f32[8,512], index: 1, kind: input, shape index: {}]
  %s2 = inlined_call_operand.hbm [shape: f32[8,512], index: 2, kind: input, shape index: {}]
  %s3 = inlined_call_operand.hbm [shape: f32[8,512], index: 3, kind: output, shape index: {}]
  %s4 = sld [smem:[#allocation0]]
  $region34: #{tpu_custom_call.1} parent=0
    _
  %s6 = ssub.s32 1, %s4
  %s7 = scalar_select 0, %s6, %s4
  $region1: #{tpu_custom_call.1} parent=0
    #allocation2 [shape = 'u8[16384]{0}', space=vmem, size = 0x4000, scoped, tag = 'input window, operand 0, single buffered']
    #allocation3 [shape = 's32[1]{0}', space=sflag, size = 0x4, scoped, tag = 'scoped memory for tpu_custom_call.1']
    #allocation4 [shape = 's32[1]{0}', space=sflag, size = 0x4, scoped, tag = 'scoped memory for tpu_custom_call.1']
    #allocation5 [shape = 'u8[16384]{0}', space=vmem, size = 0x4000, scoped, tag = 'input window, operand 1, single buffered']
    #allocation6 [shape = 's32[1]{0}', space=sflag, size = 0x4, scoped, tag = 'scoped memory for tpu_custom_call.1']
    #allocation7 [shape = 'u8[16384]{0}', space=vmem, size = 0x4000, scoped, tag = 'input window, operand 2, single buffered']
    #allocation8 [shape = 'u8[16384]{0}', space=vmem, size = 0x4000, scoped, tag = 'output window, operand 0, single buffered']
    %8 = vsyncpa [#allocation3], 0
    %9 = vsyncpa [#allocation6], 0
    %10 = vsyncpa [#allocation4], 0
    // Predicated region
    $region2: #{tpu_custom_call.1} parent=1 // pred_check
      _
    $region3: #{tpu_custom_call.1} parent=1 // pred_check_branch
      %12 = sbr.rel (0) target = $region5
    $region4: #{tpu_custom_call.1} parent=1 // pred_region
      %s14 = ssub.s32 512, 512
      %15 = vsyncadd [#allocation3], %s14
      %s17 = sshll.u32 [#allocation2], 4
      %s18 = int_to_ptr.vmem [resolvable:$true] %s17
      %20 = dma.hbm_to_vmem [thread:$0]  %s0, 512, %s18, [#allocation3]
    $region5: #{tpu_custom_call.1} parent=1 // pred_fallthru
      _
    // Predicated region
    $region6: #{tpu_custom_call.1} parent=1 // pred_check
      _
    $region7: #{tpu_custom_call.1} parent=1 // pred_check_branch
      %22 = sbr.rel (0) target = $region9
    $region8: #{tpu_custom_call.1} parent=1 // pred_region
      %s24 = ssub.s32 512, 512
      %25 = vsyncadd [#allocation6], %s24
      %s27 = sshll.u32 [#allocation5], 4
      %s28 = int_to_ptr.vmem [resolvable:$true] %s27
      %30 = dma.hbm_to_vmem [thread:$0]  %s1, 512, %s28, [#allocation6]
    $region9: #{tpu_custom_call.1} parent=1 // pred_fallthru
      _
    // Predicated region
    $region10: #{tpu_custom_call.1} parent=1 // pred_check
      _
    $region11: #{tpu_custom_call.1} parent=1 // pred_check_branch
      %32 = sbr.rel (0) target = $region13
    $region12: #{tpu_custom_call.1} parent=1 // pred_region
      %s34 = ssub.s32 512, 512
      %35 = vsyncadd [#allocation6], %s34
      %s37 = sshll.u32 [#allocation7], 4
      %s38 = int_to_ptr.vmem [resolvable:$true] %s37
      %40 = dma.hbm_to_vmem [thread:$0]  %s2, 512, %s38, [#allocation6]
    $region13: #{tpu_custom_call.1} parent=1 // pred_fallthru
      _
    // Predicated region
    $region14: #{tpu_custom_call.1} parent=1 // pred_check
      _
    $region15: #{tpu_custom_call.1} parent=1 // pred_check_branch
      %42 = sbr.rel (0) target = $region17
    $region16: #{tpu_custom_call.1} parent=1 // pred_region
      %43 = dma.done [#allocation3], 512
    $region17: #{tpu_custom_call.1} parent=1 // pred_fallthru
      _
    // Predicated region
    $region18: #{tpu_custom_call.1} parent=1 // pred_check
      _
    $region19: #{tpu_custom_call.1} parent=1 // pred_check_branch
      %45 = sbr.rel (0) target = $region21
    $region20: #{tpu_custom_call.1} parent=1 // pred_region
      %46 = dma.done [#allocation6], 512
    $region21: #{tpu_custom_call.1} parent=1 // pred_fallthru
      _
    // Predicated region
    $region22: #{tpu_custom_call.1} parent=1 // pred_check
      _
    $region23: #{tpu_custom_call.1} parent=1 // pred_check_branch
      %48 = sbr.rel (0) target = $region25
    $region24: #{tpu_custom_call.1} parent=1 // pred_region
      %49 = dma.done [#allocation6], 512
    $region25: #{tpu_custom_call.1} parent=1 // pred_fallthru
      _
    %v50 = vld [vmem:[#allocation2] sm:$0xff]
    %v51 = vld [vmem:[#allocation2 + $0x8] sm:$0xff]
    %v52 = vld [vmem:[#allocation2 + $0x10] sm:$0xff]
    %v53 = vld [vmem:[#allocation2 + $0x18] sm:$0xff]
    %v54 = vadd.f32 %v50, %v51
    %v55 = vadd.f32 %v54, %v52
    %v56 = vadd.f32 %v55, %v53
    %57 = vadd.xlane.f32.xlu0 %v56
    %v58 = vpop.xlane.xlu0 %57
    %v59 = vmul.f32 %v50, %v50
    %v60 = vmul.f32 %v51, %v51
    %v61 = vmul.f32 %v52, %v52
    %v62 = vmul.f32 %v53, %v53
    %v63 = vadd.f32 %v59, %v60
    %v64 = vadd.f32 %v63, %v61
    %v65 = vadd.f32 %v64, %v62
    %66 = vadd.xlane.f32.xlu0 %v65
    %v67 = vpop.xlane.xlu0 %66
    %v68 = vmul.f32 %v58, 0.001953125
    %v69 = vmul.f32 %v58, %v68
    %v70 = vsub.f32 %v67, %v69
    %v71 = vmul.f32 %v70, 0.0019569471
    %v72 = vmax.f32 %v71, 0.0
    %v73 = vrsqrt.pop %v72
    %v74 = vmul.f32 %v72, %v73
    %vm75 = vcmp.eq.f32.partialorder %v72, inf
    %v76 = vsel %vm75, %v72, %v74
    %vm77 = vcmp.eq.f32.partialorder %v72, 0.0
    %v78 = vand.u32 %v72, 2147483648
    %v79 = vsel %vm77, %v78, %v76
    %v80 = vadd.f32 %v79, 1e-05
    %v81 = vrcp.pop %v80
    %v82 = vmul.f32 %v80, %v81
    %v83 = vsub.f32 2.0, %v82
    %v84 = vmul.f32 %v81, %v83
    %v85 = vsub.f32 0.0, %v68
    %v86 = vmul.f32 %v85, %v84
    %v87 = vld [vmem:[#allocation5] sm:$0xff]
    %v88 = vld [vmem:[#allocation5 + $0x8] sm:$0xff]
    %v89 = vld [vmem:[#allocation5 + $0x10] sm:$0xff]
    %v90 = vld [vmem:[#allocation5 + $0x18] sm:$0xff]
    %v91 = vld [vmem:[#allocation7] sm:$0xff]
    %v92 = vld [vmem:[#allocation7 + $0x8] sm:$0xff]
    %v93 = vld [vmem:[#allocation7 + $0x10] sm:$0xff]
    %v94 = vld [vmem:[#allocation7 + $0x18] sm:$0xff]
    %v95 = vmul.f32 %v50, %v84
    %v96 = vmul.f32 %v51, %v84
    %v97 = vmul.f32 %v52, %v84
    %v98 = vmul.f32 %v53, %v84
    %v99 = vadd.f32 %v95, %v86
    %v100 = vadd.f32 %v96, %v86
    %v101 = vadd.f32 %v97, %v86
    %v102 = vadd.f32 %v98, %v86
    %v103 = vmul.f32 %v99, %v87
    %v104 = vmul.f32 %v100, %v88
    %v105 = vmul.f32 %v101, %v89
    %v106 = vmul.f32 %v102, %v90
    %v107 = vadd.f32 %v103, %v91
    %v108 = vadd.f32 %v104, %v92
    %v109 = vadd.f32 %v105, %v93
    %v110 = vadd.f32 %v106, %v94
    %111 = vst [vmem:[#allocation8] sm:$0xff] %v107
    %112 = vst [vmem:[#allocation8 + $0x8] sm:$0xff] %v108
    %113 = vst [vmem:[#allocation8 + $0x10] sm:$0xff] %v109
    %114 = vst [vmem:[#allocation8 + $0x18] sm:$0xff] %v110
    // Predicated region
    $region26: #{tpu_custom_call.1} parent=1 // pred_check
      _
    $region27: #{tpu_custom_call.1} parent=1 // pred_check_branch
      %116 = sbr.rel (0) target = $region29
    $region28: #{tpu_custom_call.1} parent=1 // pred_region
      %s118 = ssub.s32 512, 512
      %119 = vsyncadd [#allocation4], %s118
      %s121 = sshll.u32 [#allocation8], 4
      %s122 = int_to_ptr.vmem [resolvable:$true] %s121
      %124 = dma.vmem_to_hbm [thread:$0]  %s122, 512, %s3, [#allocation4]
    $region29: #{tpu_custom_call.1} parent=1 // pred_fallthru
      _
    // Predicated region
    $region30: #{tpu_custom_call.1} parent=1 // pred_check
      _
    $region31: #{tpu_custom_call.1} parent=1 // pred_check_branch
      %126 = sbr.rel (0) target = $region33
    $region32: #{tpu_custom_call.1} parent=1 // pred_region
      %127 = dma.done [#allocation4], 512
    $region33: #{tpu_custom_call.1} parent=1 // pred_fallthru
      _
    %128 = vsyncpa [#allocation3], 1
    %129 = vsyncpa [#allocation6], 1
    %130 = vsyncpa [#allocation4], 1

</llo_original>
